<compile_context>
chip_gen: v6e
topology: v6e:2x2x1
jax: 0.10.0
libtpu: 0.0.40
codegen_flags: <defaults>
</compile_context>

<pallas_src>
import functools

import jax
import jax.numpy as jnp
import numpy as np
from jax.experimental import pallas as pl
from jax.experimental.pallas import tpu as pltpu

LANE = 128  # lane width; all packed weight blocks use full 128-lane tiles.


def _round_up(x, m):
    return (x + m - 1) // m * m


# ---------------------------------------------------------------------------
# Kernel
# ---------------------------------------------------------------------------
def qnetwork_kernel(s_ref, a_ref, p1_ref, p23_ref, out_ref, *, ni, na):
    """Fused twin-head MLP.

    s_ref:   (bb, ni)  f32 state tile
    a_ref:   (bb, na)  f32 action tile
    p1_ref:  (nip+nap+24, 128) f32   folded W1 (state rows / action rows) + b1, b2, b3
    p23_ref: (256, 128) bf16/f32     blockdiag(W2,W5) ; [W3->lane0 | W6->lane1]
    out_ref: (bb, 128)  f32          q1 in lane 0, q2 in lane 1
    """
    nip = _round_up(ni, 8)
    nap = _round_up(na, 8)
    boff = nip + nap

    s = s_ref[...]                               # (bb, ni)
    a = a_ref[...]                               # (bb, na)

    w1s = p1_ref[0:ni, :]                        # (ni, 128)  folded [W1|W4] state rows
    w1a = p1_ref[nip:nip + na, :]                # (na, 128)  folded [W1|W4] action rows
    b1 = p1_ref[boff:boff + 1, :]                # (1, 128)   folded biases
    b2 = p1_ref[boff + 8:boff + 9, :]            # (1, 128)
    b3 = p1_ref[boff + 16:boff + 17, :]          # (1, 128)

    w2 = p23_ref[0:LANE, :]                      # (128, 128) blockdiag(W2, W5)
    w3 = p23_ref[LANE:2 * LANE, :]               # (128, 128) W3 -> lane0, W6 -> lane1
    cdt = w2.dtype                               # compute dtype for layers 2/3 (bf16)

    # Layer 1 (f32): normalization already folded into W1s/W1a/b1 at pack time.
    h = jnp.dot(s, w1s, preferred_element_type=jnp.float32)
    h = h + jnp.dot(a, w1a, preferred_element_type=jnp.float32)
    h = jnp.maximum(h + b1, 0.0)

    # Layers 2/3: bf16 operands, f32 accumulation; bias add / relu stay f32.
    h = jnp.dot(h.astype(cdt), w2, preferred_element_type=jnp.float32)
    h = jnp.maximum(h + b2, 0.0)
    q = jnp.dot(h.astype(cdt), w3, preferred_element_type=jnp.float32) + b3

    out_ref[...] = q.astype(out_ref.dtype)


# ---------------------------------------------------------------------------
# Parameter packing (done ONCE, outside the per-call path)
# ---------------------------------------------------------------------------
def pack_qnetwork_params(params, num_inputs, num_actions, hidden_dim,
                         param_dtype=jnp.bfloat16):
    """Fold (x - mean)/std into layer 1 and pack params into two slabs.

    Returns:
      p1  : (round_up(ni,8)+round_up(na,8)+24, 128) f32 — folded W1 + all biases.
      p23 : (256, 128) `param_dtype`               — layers 2 and 3 weights.
    """
    D = num_inputs + num_actions
    H = hidden_dim
    assert 2 * H <= LANE, "fused-head packing assumes hidden_dim <= 64"
    nip = _round_up(num_inputs, 8)
    nap = _round_up(num_actions, 8)
    boff = nip + nap

    inv_std = (1.0 / params["xstd"]).reshape(D).astype(jnp.float32)     # (D,)
    shift = params["xmean"].reshape(1, D) * inv_std.reshape(1, D)       # (1, D) = mean/std

    # ((x - mean)/std) @ W + b  ==  x @ (W / std[:,None]) + (b - (mean/std) @ W)
    w1f = params["w1"] * inv_std[:, None]
    w4f = params["w4"] * inv_std[:, None]
    b1f = params["b1"] - shift @ params["w1"]
    b4f = params["b4"] - shift @ params["w4"]

    p1 = jnp.zeros((boff + 24, LANE), jnp.float32)
    # Layer-1 state rows / action rows, lanes [0:H) = head1, [H:2H) = head2.
    p1 = p1.at[0:num_inputs, 0:H].set(w1f[:num_inputs])
    p1 = p1.at[0:num_inputs, H:2 * H].set(w4f[:num_inputs])
    p1 = p1.at[nip:nip + num_actions, 0:H].set(w1f[num_inputs:])
    p1 = p1.at[nip:nip + num_actions, H:2 * H].set(w4f[num_inputs:])
    # Biases (each in its own 8-row-aligned section), always f32.
    p1 = p1.at[boff, 0:H].set(b1f[0])
    p1 = p1.at[boff, H:2 * H].set(b4f[0])
    p1 = p1.at[boff + 8, 0:H].set(params["b2"][0])
    p1 = p1.at[boff + 8, H:2 * H].set(params["b5"][0])
    p1 = p1.at[boff + 16, 0:1].set(params["b3"][0])
    p1 = p1.at[boff + 16, 1:2].set(params["b6"][0])

    p23 = jnp.zeros((2 * LANE, LANE), jnp.float32)
    p23 = p23.at[0:H, 0:H].set(params["w2"])                 # blockdiag(W2, W5)
    p23 = p23.at[H:2 * H, H:2 * H].set(params["w5"])
    p23 = p23.at[LANE:LANE + H, 0:1].set(params["w3"])       # W3 feeds lane 0 (q1)
    p23 = p23.at[LANE + H:LANE + 2 * H, 1:2].set(params["w6"])  # W6 feeds lane 1 (q2)
    p23 = p23.astype(param_dtype)

    return p1, p23


# ---------------------------------------------------------------------------
# Tile selection
# ---------------------------------------------------------------------------
def _pick_tile(B, block_b):
    """Choose (batch tile, padded batch).  >=2 grid steps when B > 128 (v7x has
    2 TensorCores); tile sized so power-of-two batches never need padding."""
    block_b = max(8, min(block_b, 4096))      # 4096-row cap: v7x 64 MiB VMEM guardrail
    if B <= 128:
        return B, B                           # single full block, no padding
    steps = max(2, -(-B // block_b))
    bb = _round_up(-(-B // steps), 8)
    return bb, bb * steps


# ---------------------------------------------------------------------------
# Forward wrappers
# ---------------------------------------------------------------------------
def qnetwork_forward_pallas(state, action, p1, p23, *, block_b=512):
    state = state.astype(jnp.float32)
    action = action.astype(jnp.float32)
    B, ni = state.shape
    na = action.shape[1]
    nip, nap = _round_up(ni, 8), _round_up(na, 8)
    assert p1.shape == (nip + nap + 24, LANE)
    assert p23.shape == (2 * LANE, LANE)

    bb, Bp = _pick_tile(B, block_b)
    if Bp != B:  # rare: only for non-power-of-two batches that don't tile evenly
        state = jnp.pad(state, ((0, Bp - B), (0, 0)))
        action = jnp.pad(action, ((0, Bp - B), (0, 0)))
    grid = (Bp // bb,)

    kernel = functools.partial(qnetwork_kernel, ni=ni, na=na)
    flops = 2 * Bp * ((ni + na) * LANE + LANE * LANE + LANE * LANE)
    bytes_accessed = ((state.size + action.size + Bp * LANE) * 4
                      + p1.size * p1.dtype.itemsize
                      + p23.size * p23.dtype.itemsize)

    out = pl.pallas_call(
        kernel,
        out_shape=jax.ShapeDtypeStruct((Bp, LANE), jnp.float32),
        grid=grid,
        in_specs=[
            pl.BlockSpec((bb, ni), lambda i: (i, 0)),        # batch-tiled state
            pl.BlockSpec((bb, na), lambda i: (i, 0)),        # batch-tiled action
            pl.BlockSpec(p1.shape, lambda i: (0, 0)),        # param slabs stay resident
            pl.BlockSpec(p23.shape, lambda i: (0, 0)),
        ],
        out_specs=pl.BlockSpec((bb, LANE), lambda i: (i, 0)),  # lane-dense output
        compiler_params=pltpu.CompilerParams(
            dimension_semantics=("parallel",)),
        cost_estimate=pl.CostEstimate(
            flops=flops, transcendentals=0, bytes_accessed=bytes_accessed),
    )(state, action, p1, p23)

    q = out[:B, 0:2]                 # single slice of the first two lanes
    return q[:, 0:1], q[:, 1:2]


def qnetwork_forward_xla(state, action, p1, p23):
    """Plain XLA fusion mirroring the kernel math (for small batches)."""
    state = state.astype(jnp.float32)
    action = action.astype(jnp.float32)
    ni, na = state.shape[1], action.shape[1]
    nip, nap = _round_up(ni, 8), _round_up(na, 8)
    boff = nip + nap
    cdt = p23.dtype
    h = (state @ p1[0:ni] + action @ p1[nip:nip + na]) + p1[boff:boff + 1]
    h = jax.nn.relu(h)
    h = jnp.dot(h.astype(cdt), p23[0:LANE],
                preferred_element_type=jnp.float32) + p1[boff + 8:boff + 9]
    h = jax.nn.relu(h)
    q = jnp.dot(h.astype(cdt), p23[LANE:2 * LANE],
                preferred_element_type=jnp.float32) + p1[boff + 16:boff + 17]
    return q[:, 0:1], q[:, 1:2]


def qnetwork_forward(state, action, p1, p23, *, block_b=512, min_pallas_batch=256):
    # TODO(synk): min_pallas_batch is a heuristic crossover; tune per generation.
    if state.shape[0] < min_pallas_batch:
        return qnetwork_forward_xla(state, action, p1, p23)
    return qnetwork_forward_pallas(state, action, p1, p23, block_b=block_b)


# ---------------------------------------------------------------------------
# Init (matches torch: xavier_uniform_(gain=1) weights, zero biases)
# ---------------------------------------------------------------------------
def xavier_uniform(key, fan_in, fan_out, gain=1.0):
    limit = gain * np.sqrt(6.0 / (fan_in + fan_out))
    return jax.random.uniform(key, (fan_in, fan_out), dtype=jnp.float32,
                              minval=-limit, maxval=limit)


def init_qnetwork_params(key, num_inputs, num_actions, hidden_dim, xmean, xstd):
    D = num_inputs + num_actions
    keys = jax.random.split(key, 6)
    return {
        "w1": xavier_uniform(keys[0], D, hidden_dim),
        "b1": jnp.zeros((1, hidden_dim), jnp.float32),
        "w2": xavier_uniform(keys[1], hidden_dim, hidden_dim),
        "b2": jnp.zeros((1, hidden_dim), jnp.float32),
        "w3": xavier_uniform(keys[2], hidden_dim, 1),
        "b3": jnp.zeros((1, 1), jnp.float32),
        "w4": xavier_uniform(keys[3], D, hidden_dim),
        "b4": jnp.zeros((1, hidden_dim), jnp.float32),
        "w5": xavier_uniform(keys[4], hidden_dim, hidden_dim),
        "b5": jnp.zeros((1, hidden_dim), jnp.float32),
        "w6": xavier_uniform(keys[5], hidden_dim, 1),
        "b6": jnp.zeros((1, 1), jnp.float32),
        "xmean": xmean.reshape(1, D).astype(jnp.float32),
        "xstd": xstd.reshape(1, D).astype(jnp.float32),
    }


def qnetwork_ref(state, action, params):
    """Pure-JAX reference matching the PyTorch module exactly (no folding/fusion)."""
    xu = jnp.concatenate([state, action], axis=1)
    xu = (xu - params["xmean"]) / params["xstd"]
    h1 = jax.nn.relu(xu @ params["w1"] + params["b1"])
    h1 = jax.nn.relu(h1 @ params["w2"] + params["b2"])
    q1 = h1 @ params["w3"] + params["b3"]
    h2 = jax.nn.relu(xu @ params["w4"] + params["b4"])
    h2 = jax.nn.relu(h2 @ params["w5"] + params["b5"])
    q2 = h2 @ params["w6"] + params["b6"]
    return q1, q2


if __name__ == "__main__":
    num_inputs, num_actions, hidden_dim = 6, 2, 32
    D = num_inputs + num_actions

    key = jax.random.PRNGKey(0)
    k_s, k_a, k_s2, k_a2, k_m, k_p = jax.random.split(key, 6)

    xmean = jax.random.normal(k_m, (D,), dtype=jnp.float32) * 0.1
    xstd = jnp.ones((D,), dtype=jnp.float32) * 1.5
    params = init_qnetwork_params(k_p, num_inputs, num_actions, hidden_dim, xmean, xstd)

    # Small batch (single-block kernel path) and replay-sized batch (2 grid steps).
    B_small, B_big = 8, 512
    s1 = jax.random.normal(k_s, (B_small, num_inputs), dtype=jnp.float32)
    a1 = jax.random.normal(k_a, (B_small, num_actions), dtype=jnp.float32)
    s2 = jax.random.normal(k_s2, (B_big, num_inputs), dtype=jnp.float32)
    a2 = jax.random.normal(k_a2, (B_big, num_actions), dtype=jnp.float32)

    # --- 1) f32 slabs: kernel is numerically ~exact vs the reference ---------
    p1_f32, p23_f32 = pack_qnetwork_params(params, num_inputs, num_actions,
                                           hidden_dim, param_dtype=jnp.float32)
    q1, q2 = qnetwork_forward_pallas(s1, a1, p1_f32, p23_f32)      # forced Pallas, B=8
    jax.block_until_ready(q1); jax.block_until_ready(q2)
    q1r, q2r = qnetwork_ref(s1, a1, params)
    np.testing.assert_allclose(np.asarray(q1), np.asarray(q1r), rtol=1e-4, atol=1e-4)
    np.testing.assert_allclose(np.asarray(q2), np.asarray(q2r), rtol=1e-4, atol=1e-4)

    q1, q2 = qnetwork_forward_pallas(s2, a2, p1_f32, p23_f32)      # tiled grid, B=512
    jax.block_until_ready(q1); jax.block_until_ready(q2)
    q1r, q2r = qnetwork_ref(s2, a2, params)
    np.testing.assert_allclose(np.asarray(q1), np.asarray(q1r), rtol=1e-4, atol=1e-4)
    np.testing.assert_allclose(np.asarray(q2), np.asarray(q2r), rtol=1e-4, atol=1e-4)

    # --- 2) default bf16 layer-2/3 slab (MXU fast path); looser tolerance ----
    p1_bf, p23_bf = pack_qnetwork_params(params, num_inputs, num_actions, hidden_dim)
    q1, q2 = qnetwork_forward(s2, a2, p1_bf, p23_bf)               # dispatch -> Pallas
    jax.block_until_ready(q1); jax.block_until_ready(q2)
    np.testing.assert_allclose(np.asarray(q1), np.asarray(q1r), rtol=5e-2, atol=5e-2)
    np.testing.assert_allclose(np.asarray(q2), np.asarray(q2r), rtol=5e-2, atol=5e-2)

    q1, q2 = qnetwork_forward(s1, a1, p1_bf, p23_bf)               # dispatch -> XLA (B=8)
    jax.block_until_ready(q1); jax.block_until_ready(q2)
    q1r, q2r = qnetwork_ref(s1, a1, params)
    np.testing.assert_allclose(np.asarray(q1), np.asarray(q1r), rtol=5e-2, atol=5e-2)
    np.testing.assert_allclose(np.asarray(q2), np.asarray(q2r), rtol=5e-2, atol=5e-2)

    print("KERNEL_OK")
</pallas_src>

<mosaic_0001>
module attributes {stable_mosaic.version = 11 : i64} {
  func.func @qnetwork_kernel(%arg0: i32, %arg1: memref<8x6xf32, #tpu.memory_space<vmem>>, %arg2: memref<8x2xf32, #tpu.memory_space<vmem>>, %arg3: memref<40x128xf32, #tpu.memory_space<vmem>>, %arg4: memref<256x128xf32, #tpu.memory_space<vmem>>, %arg5: memref<8x128xf32, #tpu.memory_space<vmem>>) attributes {dimension_semantics = [#tpu.dimension_semantics<parallel>], iteration_bounds = array<i64: 1>, scalar_prefetch = 0 : i64, scratch_operands = 0 : i64, tpu.core_type = #tpu.core_type<tc>, window_params = [{transform_indices = @transform_0, window_bounds = array<i64: 8, 6>}, {transform_indices = @transform_1, window_bounds = array<i64: 8, 2>}, {pipeline_mode = #tpu.pipeline_mode<synchronous>, transform_indices = @transform_2, window_bounds = array<i64: 40, 128>}, {pipeline_mode = #tpu.pipeline_mode<synchronous>, transform_indices = @transform_3, window_bounds = array<i64: 256, 128>}, {transform_indices = @transform_4, window_bounds = array<i64: 8, 128>}]} {
    %c0 = arith.constant 0 : index
    %c0_0 = arith.constant 0 : index
    %0 = vector.load %arg1[%c0, %c0_0] : memref<8x6xf32, #tpu.memory_space<vmem>>, vector<8x6xf32>
    %c0_1 = arith.constant 0 : index
    %c0_2 = arith.constant 0 : index
    %1 = vector.load %arg2[%c0_1, %c0_2] : memref<8x2xf32, #tpu.memory_space<vmem>>, vector<8x2xf32>
    %c0_3 = arith.constant 0 : index
    %c0_4 = arith.constant 0 : index
    %2 = vector.load %arg3[%c0_3, %c0_4] : memref<40x128xf32, #tpu.memory_space<vmem>>, vector<6x128xf32>
    %c8 = arith.constant 8 : index
    %c0_5 = arith.constant 0 : index
    %3 = vector.load %arg3[%c8, %c0_5] : memref<40x128xf32, #tpu.memory_space<vmem>>, vector<2x128xf32>
    %c16 = arith.constant 16 : index
    %c0_6 = arith.constant 0 : index
    %4 = vector.load %arg3[%c16, %c0_6] : memref<40x128xf32, #tpu.memory_space<vmem>>, vector<1x128xf32>
    %c24 = arith.constant 24 : index
    %c0_7 = arith.constant 0 : index
    %5 = vector.load %arg3[%c24, %c0_7] : memref<40x128xf32, #tpu.memory_space<vmem>>, vector<1x128xf32>
    %c32 = arith.constant 32 : index
    %c0_8 = arith.constant 0 : index
    %6 = vector.load %arg3[%c32, %c0_8] : memref<40x128xf32, #tpu.memory_space<vmem>>, vector<1x128xf32>
    %c0_9 = arith.constant 0 : index
    %c0_10 = arith.constant 0 : index
    %7 = vector.load %arg4[%c0_9, %c0_10] : memref<256x128xf32, #tpu.memory_space<vmem>>, vector<128x128xf32>
    %c128 = arith.constant 128 : index
    %c0_11 = arith.constant 0 : index
    %8 = vector.load %arg4[%c128, %c0_11] : memref<256x128xf32, #tpu.memory_space<vmem>>, vector<128x128xf32>
    %cst = arith.constant dense<0.000000e+00> : vector<8x128xf32>
    %9 = tpu.matmul %0, %2, %cst {dimension_numbers = #tpu.dot_dimension_numbers<[1], [0], [0], [1], [0, 0, 1, 1], [], []>} : vector<8x6xf32>, vector<6x128xf32>, vector<8x128xf32> -> vector<8x128xf32>
    %cst_12 = arith.constant dense<0.000000e+00> : vector<8x128xf32>
    %10 = tpu.matmul %1, %3, %cst_12 {dimension_numbers = #tpu.dot_dimension_numbers<[1], [0], [0], [1], [0, 0, 1, 1], [], []>} : vector<8x2xf32>, vector<2x128xf32>, vector<8x128xf32> -> vector<8x128xf32>
    %11 = arith.addf %9, %10 : vector<8x128xf32>
    %12 = vector.broadcast %4 : vector<1x128xf32> to vector<8x128xf32>
    %13 = arith.addf %11, %12 : vector<8x128xf32>
    %cst_13 = arith.constant 0.000000e+00 : f32
    %14 = vector.broadcast %cst_13 : f32 to vector<8x128xf32>
    %15 = arith.maximumf %13, %14 : vector<8x128xf32>
    %cst_14 = arith.constant dense<0.000000e+00> : vector<8x128xf32>
    %16 = tpu.matmul %15, %7, %cst_14 {dimension_numbers = #tpu.dot_dimension_numbers<[1], [0], [0], [1], [0, 0, 1, 1], [], []>} : vector<8x128xf32>, vector<128x128xf32>, vector<8x128xf32> -> vector<8x128xf32>
    %17 = vector.broadcast %5 : vector<1x128xf32> to vector<8x128xf32>
    %18 = arith.addf %16, %17 : vector<8x128xf32>
    %cst_15 = arith.constant 0.000000e+00 : f32
    %19 = vector.broadcast %cst_15 : f32 to vector<8x128xf32>
    %20 = arith.maximumf %18, %19 : vector<8x128xf32>
    %cst_16 = arith.constant dense<0.000000e+00> : vector<8x128xf32>
    %21 = tpu.matmul %20, %8, %cst_16 {dimension_numbers = #tpu.dot_dimension_numbers<[1], [0], [0], [1], [0, 0, 1, 1], [], []>} : vector<8x128xf32>, vector<128x128xf32>, vector<8x128xf32> -> vector<8x128xf32>
    %22 = vector.broadcast %6 : vector<1x128xf32> to vector<8x128xf32>
    %23 = arith.addf %21, %22 : vector<8x128xf32>
    %c0_17 = arith.constant 0 : index
    %c0_18 = arith.constant 0 : index
    %24 = vector.load %arg5[%c0_17, %c0_18] : memref<8x128xf32, #tpu.memory_space<vmem>>, vector<8x128xf32>
    tpu.vector_store %arg5[%c0_17, %c0_18], %23 {strides = array<i32>} : memref<8x128xf32, #tpu.memory_space<vmem>>, vector<8x128xf32>,
    return
  }
  func.func @transform_0(%arg0: i32) -> (i32, i32) {
    %c0_i32 = arith.constant 0 : i32
    %c0_i32_0 = arith.constant 0 : i32
    return %arg0, %c0_i32 : i32, i32
  }
  func.func @transform_1(%arg0: i32) -> (i32, i32) {
    %c0_i32 = arith.constant 0 : i32
    %c0_i32_0 = arith.constant 0 : i32
    return %arg0, %c0_i32 : i32, i32
  }
  func.func @transform_2(%arg0: i32) -> (i32, i32) {
    %c0_i32 = arith.constant 0 : i32
    %c0_i32_0 = arith.constant 0 : i32
    %c0_i32_1 = arith.constant 0 : i32
    return %c0_i32, %c0_i32_0 : i32, i32
  }
  func.func @transform_3(%arg0: i32) -> (i32, i32) {
    %c0_i32 = arith.constant 0 : i32
    %c0_i32_0 = arith.constant 0 : i32
    %c0_i32_1 = arith.constant 0 : i32
    return %c0_i32, %c0_i32_0 : i32, i32
  }
  func.func @transform_4(%arg0: i32) -> (i32, i32) {
    %c0_i32 = arith.constant 0 : i32
    %c0_i32_0 = arith.constant 0 : i32
    return %arg0, %c0_i32 : i32, i32
  }
}

</mosaic_0001>

<llo_original>
// kernel: tpu_custom_call.1
$region0: #{tpu_custom_call.1}
  #allocation0 [shape = 'u32[]', space=smem, size = 0x4, offset = 0x4, fixed_abs, tag = 'smem constant byte address 0x4 - core index']
  #allocation1 [shape = 'u32[144,128]{1,0:T(1,128)}', space=vmem, size = 0x12000, scoped, tag = 'internal scratch']
  %s0 = inlined_call_operand.vmem [shape: f32[8,6], index: 0, kind: input, shape index: {}]
  %s1 = inlined_call_operand.vmem [shape: f32[8,2], index: 1, kind: input, shape index: {}]
  %s2 = inlined_call_operand.hbm [shape: f32[40,128], index: 2, kind: input, shape index: {}]
  %s3 = inlined_call_operand.hbm [shape: f32[256,128], index: 3, kind: input, shape index: {}]
  %s4 = inlined_call_operand.hbm [shape: f32[8,128], index: 4, kind: output, shape index: {}]
  %s5 = sld [smem:[#allocation0]]
  $region34: #{tpu_custom_call.1} parent=0
    _
  %s7 = ssub.s32 1, %s5
  %s8 = scalar_select 0, %s7, %s5
  $region1: #{tpu_custom_call.1} parent=0
    #allocation2 [shape = 'u8[20480]{0}', space=vmem, size = 0x5000, scoped, tag = 'input window, operand 2, single buffered']
    #allocation3 [shape = 's32[1]{0}', space=sflag, size = 0x4, scoped, tag = 'scoped memory for tpu_custom_call.1']
    #allocation4 [shape = 's32[1]{0}', space=sflag, size = 0x4, scoped, tag = 'scoped memory for tpu_custom_call.1']
    #allocation5 [shape = 'u8[131072]{0}', space=vmem, size = 0x20000, scoped, tag = 'input window, operand 3, single buffered']
    #allocation6 [shape = 's32[1]{0}', space=sflag, size = 0x4, scoped, tag = 'scoped memory for tpu_custom_call.1']
    #allocation7 [shape = 'u8[4096]{0}', space=vmem, size = 0x1000, scoped, tag = 'output window, operand 0, single buffered']
    %9 = vsyncpa [#allocation3], 0
    %10 = vsyncpa [#allocation6], 0
    %11 = vsyncpa [#allocation4], 0
    // Predicated region
    $region2: #{tpu_custom_call.1} parent=1 // pred_check
      _
    $region3: #{tpu_custom_call.1} parent=1 // pred_check_branch
      %13 = sbr.rel (0) target = $region5
    $region4: #{tpu_custom_call.1} parent=1 // pred_region
      _
    $region5: #{tpu_custom_call.1} parent=1 // pred_fallthru
      _
    // Predicated region
    $region6: #{tpu_custom_call.1} parent=1 // pred_check
      _
    $region7: #{tpu_custom_call.1} parent=1 // pred_check_branch
      %15 = sbr.rel (0) target = $region9
    $region8: #{tpu_custom_call.1} parent=1 // pred_region
      _
    $region9: #{tpu_custom_call.1} parent=1 // pred_fallthru
      _
    // Predicated region
    $region10: #{tpu_custom_call.1} parent=1 // pred_check
      _
    $region11: #{tpu_custom_call.1} parent=1 // pred_check_branch
      %17 = sbr.rel (0) target = $region13
    $region12: #{tpu_custom_call.1} parent=1 // pred_region
      %s19 = ssub.s32 640, 640
      %20 = vsyncadd [#allocation3], %s19
      %s21 = sshll.u32 [#allocation2], 4
      %s22 = int_to_ptr.vmem [resolvable:$true] %s21
      %27 = dma.hbm_to_vmem [thread:$0]  %s2, 640, %s22, [#allocation3], 128, 128, 8
    $region13: #{tpu_custom_call.1} parent=1 // pred_fallthru
      _
    // Predicated region
    $region14: #{tpu_custom_call.1} parent=1 // pred_check
      _
    $region15: #{tpu_custom_call.1} parent=1 // pred_check_branch
      %29 = sbr.rel (0) target = $region17
    $region16: #{tpu_custom_call.1} parent=1 // pred_region
      %s31 = ssub.s32 4096, 4096
      %32 = vsyncadd [#allocation6], %s31
      %s33 = sshll.u32 [#allocation5], 4
      %s34 = int_to_ptr.vmem [resolvable:$true] %s33
      %39 = dma.hbm_to_vmem [thread:$0]  %s3, 4096, %s34, [#allocation6], 128, 128, 8
    $region17: #{tpu_custom_call.1} parent=1 // pred_fallthru
      _
    // Predicated region
    $region18: #{tpu_custom_call.1} parent=1 // pred_check
      _
    $region19: #{tpu_custom_call.1} parent=1 // pred_check_branch
      %41 = sbr.rel (0) target = $region21
    $region20: #{tpu_custom_call.1} parent=1 // pred_region
      %42 = dma.done [#allocation3], 640
    $region21: #{tpu_custom_call.1} parent=1 // pred_fallthru
      _
    // Predicated region
    $region22: #{tpu_custom_call.1} parent=1 // pred_check
      _
    $region23: #{tpu_custom_call.1} parent=1 // pred_check_branch
      %44 = sbr.rel (0) target = $region25
    $region24: #{tpu_custom_call.1} parent=1 // pred_region
      %45 = dma.done [#allocation6], 4096
    $region25: #{tpu_custom_call.1} parent=1 // pred_fallthru
      _
    %v46 = vld [vmem:[%s0] sm:$0xff]
    %v47 = vld [vmem:[%s1] sm:$0xff]
    %v48 = vld [vmem:[#allocation2] sm:$0x3f]
    %v49 = vld [vmem:[#allocation2 + $0x8] sm:$0x3]
    %v50 = vld [vmem:[#allocation2 + $0x10] sm:$0x1]
    %v51 = vld [vmem:[#allocation2 + $0x18] sm:$0x1]
    %v52 = vld [vmem:[#allocation2 + $0x20] sm:$0x1]
    %v53 = vld [vmem:[#allocation5] sm:$0xff]
    %v54 = vld [vmem:[#allocation5 + $0x8] sm:$0xff]
    %v55 = vld [vmem:[#allocation5 + $0x10] sm:$0xff]
    %v56 = vld [vmem:[#allocation5 + $0x18] sm:$0xff]
    %v57 = vld [vmem:[#allocation5 + $0x20] sm:$0xff]
    %v58 = vld [vmem:[#allocation5 + $0x28] sm:$0xff]
    %v59 = vld [vmem:[#allocation5 + $0x30] sm:$0xff]
    %v60 = vld [vmem:[#allocation5 + $0x38] sm:$0xff]
    %v61 = vld [vmem:[#allocation5 + $0x40] sm:$0xff]
    %v62 = vld [vmem:[#allocation5 + $0x48] sm:$0xff]
    %v63 = vld [vmem:[#allocation5 + $0x50] sm:$0xff]
    %v64 = vld [vmem:[#allocation5 + $0x58] sm:$0xff]
    %v65 = vld [vmem:[#allocation5 + $0x60] sm:$0xff]
    %v66 = vld [vmem:[#allocation5 + $0x68] sm:$0xff]
    %v67 = vld [vmem:[#allocation5 + $0x70] sm:$0xff]
    %v68 = vld [vmem:[#allocation5 + $0x78] sm:$0xff]
    %v69 = vld [vmem:[#allocation5 + $0x80] sm:$0xff]
    %v70 = vld [vmem:[#allocation5 + $0x88] sm:$0xff]
    %v71 = vld [vmem:[#allocation5 + $0x90] sm:$0xff]
    %v72 = vld [vmem:[#allocation5 + $0x98] sm:$0xff]
    %v73 = vld [vmem:[#allocation5 + $0xa0] sm:$0xff]
    %v74 = vld [vmem:[#allocation5 + $0xa8] sm:$0xff]
    %v75 = vld [vmem:[#allocation5 + $0xb0] sm:$0xff]
    %v76 = vld [vmem:[#allocation5 + $0xb8] sm:$0xff]
    %v77 = vld [vmem:[#allocation5 + $0xc0] sm:$0xff]
    %v78 = vld [vmem:[#allocation5 + $0xc8] sm:$0xff]
    %v79 = vld [vmem:[#allocation5 + $0xd0] sm:$0xff]
    %v80 = vld [vmem:[#allocation5 + $0xd8] sm:$0xff]
    %v81 = vld [vmem:[#allocation5 + $0xe0] sm:$0xff]
    %v82 = vld [vmem:[#allocation5 + $0xe8] sm:$0xff]
    %v83 = vld [vmem:[#allocation5 + $0xf0] sm:$0xff]
    %v84 = vld [vmem:[#allocation5 + $0xf8] sm:$0xff]
    %vm85 = vcmask 15360
    %v87 = vsel %vm85, %v47, 0
    %vm89 = vcmask 1041408
    %v91 = vsel %vm89, %v49, 0
    %93 = vmatprep.subr.mxu0 0.0
    %94 = vmatpush1.msra.mxu0 0.0
    %95 = vmatprep.subr.mxu0 0.0
    %96 = vmatpush1.msra.mxu0 0.0
    %97 = vmatprep.subr.mxu0 0.0
    %98 = vmatpush1.msra.mxu0 0.0
    %99 = vmatprep.subr.mxu0 0.0
    %100 = vmatpush1.msra.mxu0 0.0
    %101 = vmatprep.subr.mxu0 0.0
    %102 = vmatpush1.msra.mxu0 0.0
    %103 = vmatprep.subr.mxu0 0.0
    %104 = vmatpush1.msra.mxu0 0.0
    %105 = vmatprep.subr.mxu0 0.0
    %106 = vmatpush1.msra.mxu0 0.0
    %107 = vmatprep.subr.mxu0 0.0
    %108 = vmatpush1.msra.mxu0 0.0
    %109 = vmatprep.subr.mxu0 0.0
    %110 = vmatpush1.msra.mxu0 0.0
    %111 = vmatprep.subr.mxu0 0.0
    %112 = vmatpush1.msra.mxu0 0.0
    %113 = vmatprep.subr.mxu0 0.0
    %114 = vmatpush1.msra.mxu0 0.0
    %115 = vmatprep.subr.mxu0 0.0
    %116 = vmatpush1.msra.mxu0 0.0
    %117 = vmatprep.subr.mxu0 0.0
    %118 = vmatpush1.msra.mxu0 0.0
    %119 = vmatprep.subr.mxu0 0.0
    %120 = vmatpush1.msra.mxu0 0.0
    %121 = vmatprep.subr.mxu0 0.0
    %122 = vmatpush1.msra.mxu0 0.0
    %123 = vmatprep.subr.mxu0 0.0
    %124 = vmatpush1.msra.mxu0 %v91
    %125 = vmatprep.subr.mxu0 0.0
    %126 = vmatpush2.msra.mxu0 0.0
    %127 = vmatprep.subr.mxu0 0.0
    %128 = vmatpush2.msra.mxu0 0.0
    %129 = vmatprep.subr.mxu0 0.0
    %130 = vmatpush2.msra.mxu0 0.0
    %131 = vmatprep.subr.mxu0 0.0
    %132 = vmatpush2.msra.mxu0 0.0
    %133 = vmatprep.subr.mxu0 0.0
    %134 = vmatpush2.msra.mxu0 0.0
    %135 = vmatprep.subr.mxu0 0.0
    %136 = vmatpush2.msra.mxu0 0.0
    %137 = vmatprep.subr.mxu0 0.0
    %138 = vmatpush2.msra.mxu0 0.0
    %139 = vmatprep.subr.mxu0 0.0
    %140 = vmatpush2.msra.mxu0 0.0
    %141 = vmatprep.subr.mxu0 0.0
    %142 = vmatpush2.msra.mxu0 0.0
    %143 = vmatprep.subr.mxu0 0.0
    %144 = vmatpush2.msra.mxu0 0.0
    %145 = vmatprep.subr.mxu0 0.0
    %146 = vmatpush2.msra.mxu0 0.0
    %147 = vmatprep.subr.mxu0 0.0
    %148 = vmatpush2.msra.mxu0 0.0
    %149 = vmatprep.subr.mxu0 0.0
    %150 = vmatpush2.msra.mxu0 0.0
    %151 = vmatprep.subr.mxu0 0.0
    %152 = vmatpush2.msra.mxu0 0.0
    %153 = vmatprep.subr.mxu0 0.0
    %154 = vmatpush2.msra.mxu0 0.0
    %155 = vmatprep.subr.mxu0 0.0
    %156 = vmatpush2.msra.mxu0 0.0
    %157 = vmatprep.mubr.f32.mxu0 0.0
    %158 = vmatmul.mubr.f32.gmra.mxu0 %v87
    %v159 = vpop.f32.mrf.mxu0
    %v160 = vadd.f32 0.0, %v159
    %v161 = vpop.f32.mrf.mxu0
    %162 = vdwg.mxu0
    %vm163 = vcmask 48128
    %v165 = vsel %vm163, %v46, 0
    %vm167 = vcmask 1045504
    %v169 = vsel %vm167, %v48, 0
    %171 = vmatprep.subr.mxu0 0.0
    %172 = vmatpush1.msra.mxu0 0.0
    %173 = vmatprep.subr.mxu0 0.0
    %174 = vmatpush1.msra.mxu0 0.0
    %175 = vmatprep.subr.mxu0 0.0
    %176 = vmatpush1.msra.mxu0 0.0
    %177 = vmatprep.subr.mxu0 0.0
    %178 = vmatpush1.msra.mxu0 0.0
    %179 = vmatprep.subr.mxu0 0.0
    %180 = vmatpush1.msra.mxu0 0.0
    %181 = vmatprep.subr.mxu0 0.0
    %182 = vmatpush1.msra.mxu0 0.0
    %183 = vmatprep.subr.mxu0 0.0
    %184 = vmatpush1.msra.mxu0 0.0
    %185 = vmatprep.subr.mxu0 0.0
    %186 = vmatpush1.msra.mxu0 0.0
    %187 = vmatprep.subr.mxu0 0.0
    %188 = vmatpush1.msra.mxu0 0.0
    %189 = vmatprep.subr.mxu0 0.0
    %190 = vmatpush1.msra.mxu0 0.0
    %191 = vmatprep.subr.mxu0 0.0
    %192 = vmatpush1.msra.mxu0 0.0
    %193 = vmatprep.subr.mxu0 0.0
    %194 = vmatpush1.msra.mxu0 0.0
    %195 = vmatprep.subr.mxu0 0.0
    %196 = vmatpush1.msra.mxu0 0.0
    %197 = vmatprep.subr.mxu0 0.0
    %198 = vmatpush1.msra.mxu0 0.0
    %199 = vmatprep.subr.mxu0 0.0
    %200 = vmatpush1.msra.mxu0 0.0
    %201 = vmatprep.subr.mxu0 0.0
    %202 = vmatpush1.msra.mxu0 %v169
    %203 = vmatprep.subr.mxu0 0.0
    %204 = vmatpush2.msra.mxu0 0.0
    %205 = vmatprep.subr.mxu0 0.0
    %206 = vmatpush2.msra.mxu0 0.0
    %207 = vmatprep.subr.mxu0 0.0
    %208 = vmatpush2.msra.mxu0 0.0
    %209 = vmatprep.subr.mxu0 0.0
    %210 = vmatpush2.msra.mxu0 0.0
    %211 = vmatprep.subr.mxu0 0.0
    %212 = vmatpush2.msra.mxu0 0.0
    %213 = vmatprep.subr.mxu0 0.0
    %214 = vmatpush2.msra.mxu0 0.0
    %215 = vmatprep.subr.mxu0 0.0
    %216 = vmatpush2.msra.mxu0 0.0
    %217 = vmatprep.subr.mxu0 0.0
    %218 = vmatpush2.msra.mxu0 0.0
    %219 = vmatprep.subr.mxu0 0.0
    %220 = vmatpush2.msra.mxu0 0.0
    %221 = vmatprep.subr.mxu0 0.0
    %222 = vmatpush2.msra.mxu0 0.0
    %223 = vmatprep.subr.mxu0 0.0
    %224 = vmatpush2.msra.mxu0 0.0
    %225 = vmatprep.subr.mxu0 0.0
    %226 = vmatpush2.msra.mxu0 0.0
    %227 = vmatprep.subr.mxu0 0.0
    %228 = vmatpush2.msra.mxu0 0.0
    %229 = vmatprep.subr.mxu0 0.0
    %230 = vmatpush2.msra.mxu0 0.0
    %231 = vmatprep.subr.mxu0 0.0
    %232 = vmatpush2.msra.mxu0 0.0
    %233 = vmatprep.subr.mxu0 0.0
    %234 = vmatpush2.msra.mxu0 0.0
    %235 = vmatprep.mubr.f32.mxu0 0.0
    %236 = vmatmul.mubr.f32.gmra.mxu0 %v165
    %v237 = vpop.f32.mrf.mxu0
    %v238 = vadd.f32 %v160, %v237
    %v239 = vpop.f32.mrf.mxu0
    %240 = vdwg.mxu0
    %v241 = vlaneseq
    %v242 = vshrl.u32 %v241, 7
    %v243 = vsub.s32 0, %v242
    %v244 = vrot.slane %v50, %v243
    %v245 = vadd.f32 %v238, %v244
    %v246 = vmax.f32 %v245, 0.0
    %v247 = vlaneseq
    %v248 = vshrl.u32 %v247, 7
    %v249 = vsub.s32 0, %v248
    %v250 = vrot.slane %v51, %v249
    %251 = vmatprep.subr.mxu0 0.0
    %252 = vmatpush1.msra.mxu0 %v68
    %253 = vmatprep.subr.mxu0 0.0
    %254 = vmatpush1.msra.mxu0 %v67
    %255 = vmatprep.subr.mxu0 0.0
    %256 = vmatpush1.msra.mxu0 %v66
    %257 = vmatprep.subr.mxu0 0.0
    %258 = vmatpush1.msra.mxu0 %v65
    %259 = vmatprep.subr.mxu0 0.0
    %260 = vmatpush1.msra.mxu0 %v64
    %261 = vmatprep.subr.mxu0 0.0
    %262 = vmatpush1.msra.mxu0 %v63
    %263 = vmatprep.subr.mxu0 0.0
    %264 = vmatpush1.msra.mxu0 %v62
    %265 = vmatprep.subr.mxu0 0.0
    %266 = vmatpush1.msra.mxu0 %v61
    %267 = vmatprep.subr.mxu0 0.0
    %268 = vmatpush1.msra.mxu0 %v60
    %269 = vmatprep.subr.mxu0 0.0
    %270 = vmatpush1.msra.mxu0 %v59
    %271 = vmatprep.subr.mxu0 0.0
    %272 = vmatpush1.msra.mxu0 %v58
    %273 = vmatprep.subr.mxu0 0.0
    %274 = vmatpush1.msra.mxu0 %v57
    %275 = vmatprep.subr.mxu0 0.0
    %276 = vmatpush1.msra.mxu0 %v56
    %277 = vmatprep.subr.mxu0 0.0
    %278 = vmatpush1.msra.mxu0 %v55
    %279 = vmatprep.subr.mxu0 0.0
    %280 = vmatpush1.msra.mxu0 %v54
    %281 = vmatprep.subr.mxu0 0.0
    %282 = vmatpush1.msra.mxu0 %v53
    %283 = vmatprep.subr.mxu0 0.0
    %284 = vmatpush2.msra.mxu0 0.0
    %285 = vmatprep.subr.mxu0 0.0
    %286 = vmatpush2.msra.mxu0 0.0
    %287 = vmatprep.subr.mxu0 0.0
    %288 = vmatpush2.msra.mxu0 0.0
    %289 = vmatprep.subr.mxu0 0.0
    %290 = vmatpush2.msra.mxu0 0.0
    %291 = vmatprep.subr.mxu0 0.0
    %292 = vmatpush2.msra.mxu0 0.0
    %293 = vmatprep.subr.mxu0 0.0
    %294 = vmatpush2.msra.mxu0 0.0
    %295 = vmatprep.subr.mxu0 0.0
    %296 = vmatpush2.msra.mxu0 0.0
    %297 = vmatprep.subr.mxu0 0.0
    %298 = vmatpush2.msra.mxu0 0.0
    %299 = vmatprep.subr.mxu0 0.0
    %300 = vmatpush2.msra.mxu0 0.0
    %301 = vmatprep.subr.mxu0 0.0
    %302 = vmatpush2.msra.mxu0 0.0
    %303 = vmatprep.subr.mxu0 0.0
    %304 = vmatpush2.msra.mxu0 0.0
    %305 = vmatprep.subr.mxu0 0.0
    %306 = vmatpush2.msra.mxu0 0.0
    %307 = vmatprep.subr.mxu0 0.0
    %308 = vmatpush2.msra.mxu0 0.0
    %309 = vmatprep.subr.mxu0 0.0
    %310 = vmatpush2.msra.mxu0 0.0
    %311 = vmatprep.subr.mxu0 0.0
    %312 = vmatpush2.msra.mxu0 0.0
    %313 = vmatprep.subr.mxu0 0.0
    %314 = vmatpush2.msra.mxu0 0.0
    %315 = vmatprep.mubr.f32.mxu0 0.0
    %316 = vmatmul.mubr.f32.gmra.mxu0 %v246
    %v317 = vpop.f32.mrf.mxu0
    %v318 = vadd.f32 %v250, %v317
    %v319 = vpop.f32.mrf.mxu0
    %320 = vdwg.mxu0
    %v321 = vmax.f32 %v318, 0.0
    %v322 = vlaneseq
    %v323 = vshrl.u32 %v322, 7
    %v324 = vsub.s32 0, %v323
    %v325 = vrot.slane %v52, %v324
    %326 = vmatprep.subr.mxu0 0.0
    %327 = vmatpush1.msra.mxu0 %v84
    %328 = vmatprep.subr.mxu0 0.0
    %329 = vmatpush1.msra.mxu0 %v83
    %330 = vmatprep.subr.mxu0 0.0
    %331 = vmatpush1.msra.mxu0 %v82
    %332 = vmatprep.subr.mxu0 0.0
    %333 = vmatpush1.msra.mxu0 %v81
    %334 = vmatprep.subr.mxu0 0.0
    %335 = vmatpush1.msra.mxu0 %v80
    %336 = vmatprep.subr.mxu0 0.0
    %337 = vmatpush1.msra.mxu0 %v79
    %338 = vmatprep.subr.mxu0 0.0
    %339 = vmatpush1.msra.mxu0 %v78
    %340 = vmatprep.subr.mxu0 0.0
    %341 = vmatpush1.msra.mxu0 %v77
    %342 = vmatprep.subr.mxu0 0.0
    %343 = vmatpush1.msra.mxu0 %v76
    %344 = vmatprep.subr.mxu0 0.0
    %345 = vmatpush1.msra.mxu0 %v75
    %346 = vmatprep.subr.mxu0 0.0
    %347 = vmatpush1.msra.mxu0 %v74
    %348 = vmatprep.subr.mxu0 0.0
    %349 = vmatpush1.msra.mxu0 %v73
    %350 = vmatprep.subr.mxu0 0.0
    %351 = vmatpush1.msra.mxu0 %v72
    %352 = vmatprep.subr.mxu0 0.0
    %353 = vmatpush1.msra.mxu0 %v71
    %354 = vmatprep.subr.mxu0 0.0
    %355 = vmatpush1.msra.mxu0 %v70
    %356 = vmatprep.subr.mxu0 0.0
    %357 = vmatpush1.msra.mxu0 %v69
    %358 = vmatprep.subr.mxu0 0.0
    %359 = vmatpush2.msra.mxu0 0.0
    %360 = vmatprep.subr.mxu0 0.0
    %361 = vmatpush2.msra.mxu0 0.0
    %362 = vmatprep.subr.mxu0 0.0
    %363 = vmatpush2.msra.mxu0 0.0
    %364 = vmatprep.subr.mxu0 0.0
    %365 = vmatpush2.msra.mxu0 0.0
    %366 = vmatprep.subr.mxu0 0.0
    %367 = vmatpush2.msra.mxu0 0.0
    %368 = vmatprep.subr.mxu0 0.0
    %369 = vmatpush2.msra.mxu0 0.0
    %370 = vmatprep.subr.mxu0 0.0
    %371 = vmatpush2.msra.mxu0 0.0
    %372 = vmatprep.subr.mxu0 0.0
    %373 = vmatpush2.msra.mxu0 0.0
    %374 = vmatprep.subr.mxu0 0.0
    %375 = vmatpush2.msra.mxu0 0.0
    %376 = vmatprep.subr.mxu0 0.0
    %377 = vmatpush2.msra.mxu0 0.0
    %378 = vmatprep.subr.mxu0 0.0
    %379 = vmatpush2.msra.mxu0 0.0
    %380 = vmatprep.subr.mxu0 0.0
    %381 = vmatpush2.msra.mxu0 0.0
    %382 = vmatprep.subr.mxu0 0.0
    %383 = vmatpush2.msra.mxu0 0.0
    %384 = vmatprep.subr.mxu0 0.0
    %385 = vmatpush2.msra.mxu0 0.0
    %386 = vmatprep.subr.mxu0 0.0
    %387 = vmatpush2.msra.mxu0 0.0
    %388 = vmatprep.subr.mxu0 0.0
    %389 = vmatpush2.msra.mxu0 0.0
    %390 = vmatprep.mubr.f32.mxu0 0.0
    %391 = vmatmul.mubr.f32.gmra.mxu0 %v321
    %v392 = vpop.f32.mrf.mxu0
    %v393 = vadd.f32 %v325, %v392
    %v394 = vpop.f32.mrf.mxu0
    %395 = vdwg.mxu0
    %396 = vst [vmem:[#allocation7] sm:$0xff] %v393
    // Predicated region
    $region26: #{tpu_custom_call.1} parent=1 // pred_check
      _
    $region27: #{tpu_custom_call.1} parent=1 // pred_check_branch
      %398 = sbr.rel (0) target = $region29
    $region28: #{tpu_custom_call.1} parent=1 // pred_region
      %s400 = ssub.s32 128, 128
      %401 = vsyncadd [#allocation4], %s400
      %s403 = sshll.u32 [#allocation7], 4
      %s404 = int_to_ptr.vmem [resolvable:$true] %s403
      %406 = dma.vmem_to_hbm [thread:$0]  %s404, 128, %s4, [#allocation4]
    $region29: #{tpu_custom_call.1} parent=1 // pred_fallthru
      _
    // Predicated region
    $region30: #{tpu_custom_call.1} parent=1 // pred_check
      _
    $region31: #{tpu_custom_call.1} parent=1 // pred_check_branch
      %408 = sbr.rel (0) target = $region33
    $region32: #{tpu_custom_call.1} parent=1 // pred_region
      %409 = dma.done [#allocation4], 128
    $region33: #{tpu_custom_call.1} parent=1 // pred_fallthru
      _
    %410 = vsyncpa [#allocation3], 1
    %411 = vsyncpa [#allocation6], 1
    %412 = vsyncpa [#allocation4], 1

</llo_original>
